<compile_context>
chip_gen: v6e
topology: v6e:2x2x1
jax: 0.10.0
libtpu: 0.0.40
codegen_flags: <defaults>
</compile_context>

<pallas_src>
import functools

import jax
import jax.numpy as jnp
from jax.experimental import pallas as pl
from jax.experimental.pallas import tpu as pltpu


def _layer_norm_kernel(x_ref, g_ref, b_ref, o_ref, *, eps, n_reduce):
    # x_ref block: (b_tile, D) -- batch on sublanes, reduce span D = C*S on lanes.
    # g_ref / b_ref: (1, D) lane-dense, channel-expanded affine params.
    x = x_ref[...].astype(jnp.float32)                             # (b, D)

    mean = jnp.sum(x, axis=1, keepdims=True) / n_reduce            # (b, 1), lane reduce
    diff = x - mean
    # torch.Tensor.std defaults to the unbiased estimator (divide by N-1).
    var = jnp.sum(diff * diff, axis=1, keepdims=True) / (n_reduce - 1)
    std = jnp.sqrt(var)

    # eps added to std (not variance), matching the reference module.
    # Per-row reciprocal instead of a full-block divide; gamma folded into the
    # scale -> elementwise work is mul + mul + add.  approx=True would push
    # this onto the EUP, but it only touches b_tile scalars so exact is free.
    inv = pl.reciprocal(std + eps, approx=False)                   # (b, 1)
    scale = g_ref[...] * inv                                       # (1,D)*(b,1) -> (b,D)
    o_ref[...] = (diff * scale + b_ref[...]).astype(o_ref.dtype)


def layer_norm(x, gamma=None, beta=None, *, eps=1e-5, affine=True):
    """Forward of LayerNorm(num_features=C, eps, affine) for inputs shaped
    (N, C, *spatial).  Matches the PyTorch module's semantics (the x.size(0)==1
    branch is identical to the per-sample branch when N == 1)."""
    if affine and (gamma is None or beta is None):
        raise ValueError("affine=True requires gamma and beta")

    orig_shape = x.shape
    n = orig_shape[0]
    c = orig_shape[1] if x.ndim > 1 else 1
    s = 1
    for dim in orig_shape[2:]:
        s *= dim
    d = c * s
    n_reduce = d  # NOTE: n_reduce == 1 gives inf/NaN, same as torch.std of one element.

    x2 = x.reshape(n, d)  # free reshape (row-major: channel blocks stay contiguous)

    if affine:
        g2 = jnp.repeat(gamma.astype(jnp.float32), s).reshape(1, d)
        b2 = jnp.repeat(beta.astype(jnp.float32), s).reshape(1, d)
    else:
        g2 = jnp.ones((1, d), jnp.float32)
        b2 = jnp.zeros((1, d), jnp.float32)

    itemsize = x.dtype.itemsize
    sublane = 8 * max(4 // itemsize, 1)      # f32: 8, bf16: 16, int8/fp8: 32
    bytes_per_row = d * itemsize
    # ~2 MiB per input block; real VMEM footprint ~5-7x with double-buffered
    # in/out plus f32 temporaries, comfortably under the 32 MiB scoped limit.
    max_block_bytes = 2 * 1024 * 1024

    if n <= sublane:
        b_tile = n                           # block == full batch dim (allowed by tiling rules)
    else:
        rows_budget = max(max_block_bytes // bytes_per_row, 1)
        b_tile = max((rows_budget // sublane) * sublane, sublane)
        # >= 2 grid steps when possible so the parallel axis shards across v7x's 2 TCs.
        b_tile = min(b_tile, max(((n - 1) // sublane) * sublane, sublane))

    # TODO(synk): for per-sample reduce spans too large for one VMEM block, add
    # a second grid axis over the reduce span with running sum/sum-sq accumulators.
    if b_tile * bytes_per_row > 2 * max_block_bytes:
        raise NotImplementedError(
            "per-sample reduce span too large for a single VMEM block")

    num_blocks = pl.cdiv(n, b_tile)          # ragged last block: padded rows discarded

    kern = functools.partial(_layer_norm_kernel, eps=eps, n_reduce=n_reduce)

    out2 = pl.pallas_call(
        kern,
        out_shape=jax.ShapeDtypeStruct((n, d), x.dtype),
        grid_spec=pltpu.PrefetchScalarGridSpec(
            num_scalar_prefetch=0,
            grid=(num_blocks,),
            in_specs=[
                pl.BlockSpec((b_tile, d), lambda i: (i, 0)),
                pl.BlockSpec((1, d), lambda i: (0, 0)),
                pl.BlockSpec((1, d), lambda i: (0, 0)),
            ],
            out_specs=pl.BlockSpec((b_tile, d), lambda i: (i, 0)),
        ),
        compiler_params=pltpu.CompilerParams(
            dimension_semantics=("parallel",),
            vmem_limit_bytes=32 * 1024 * 1024,
        ),
    )(x2, g2, b2)

    return out2.reshape(orig_shape)


def _reference(x, gamma, beta, eps):
    n = x.shape[0]
    xf = x.reshape(n, -1)
    bshape = (n,) + (1,) * (x.ndim - 1)
    mean = xf.mean(axis=1).reshape(bshape)
    std = jnp.std(xf, axis=1, ddof=1).reshape(bshape)
    y = (x - mean) / (std + eps)
    gshape = (1, x.shape[1]) + (1,) * (x.ndim - 2)
    return y * gamma.reshape(gshape) + beta.reshape(gshape)


if __name__ == "__main__":
    # LayerNorm(num_features=4) on an NCHW activation (batch=2, channels=4, 16x16).
    N, C, H, W = 2, 4, 16, 16
    EPS = 1e-5

    key = jax.random.PRNGKey(0)
    kx, kg, kx2 = jax.random.split(key, 3)
    x = jax.random.normal(kx, (N, C, H, W), jnp.float32)
    gamma = jax.random.uniform(kg, (C,), jnp.float32)     # torch .uniform_()
    beta = jnp.zeros((C,), jnp.float32)                   # torch.zeros

    out = layer_norm(x, gamma, beta, eps=EPS, affine=True)
    out = jax.block_until_ready(out)
    ref = _reference(x, gamma, beta, EPS)
    assert out.shape == (N, C, H, W)
    assert jnp.allclose(out, ref, atol=1e-5, rtol=1e-5), \
        float(jnp.max(jnp.abs(out - ref)))

    # Second tiny case: exercises a multi-step grid with a ragged last batch
    # tile (N=19 -> b_tile=16, grid=(2,), last block has 3 valid rows).
    N2 = 19
    x_big = jax.random.normal(kx2, (N2, C, H, W), jnp.float32)
    out_big = jax.block_until_ready(layer_norm(x_big, gamma, beta, eps=EPS, affine=True))
    ref_big = _reference(x_big, gamma, beta, EPS)
    assert out_big.shape == (N2, C, H, W)
    assert jnp.allclose(out_big, ref_big, atol=1e-5, rtol=1e-5), \
        float(jnp.max(jnp.abs(out_big - ref_big)))

    print("KERNEL_OK")
</pallas_src>

<mosaic_0001>
module attributes {stable_mosaic.version = 11 : i64} {
  func.func @_layer_norm_kernel(%arg0: i32, %arg1: memref<2x1024xf32, #tpu.memory_space<vmem>>, %arg2: memref<1x1024xf32, #tpu.memory_space<vmem>>, %arg3: memref<1x1024xf32, #tpu.memory_space<vmem>>, %arg4: memref<2x1024xf32, #tpu.memory_space<vmem>>) attributes {dimension_semantics = [#tpu.dimension_semantics<parallel>], iteration_bounds = array<i64: 1>, scalar_prefetch = 0 : i64, scratch_operands = 0 : i64, tpu.core_type = #tpu.core_type<tc>, window_params = [{transform_indices = @transform_0, window_bounds = array<i64: 2, 1024>}, {pipeline_mode = #tpu.pipeline_mode<synchronous>, transform_indices = @transform_1, window_bounds = array<i64: 1, 1024>}, {pipeline_mode = #tpu.pipeline_mode<synchronous>, transform_indices = @transform_2, window_bounds = array<i64: 1, 1024>}, {transform_indices = @transform_3, window_bounds = array<i64: 2, 1024>}]} {
    %c0 = arith.constant 0 : index
    %c0_0 = arith.constant 0 : index
    %0 = vector.load %arg1[%c0, %c0_0] : memref<2x1024xf32, #tpu.memory_space<vmem>>, vector<2x1024xf32>
    %cst = arith.constant dense<0.000000e+00> : vector<2xf32>
    %1 = vector.multi_reduction <add>, %0, %cst [1] : vector<2x1024xf32> to vector<2xf32>
    %2 = vector.shape_cast %1 : vector<2xf32> to vector<2x1xf32>
    %cst_1 = arith.constant 1.024000e+03 : f32
    %3 = vector.broadcast %cst_1 : f32 to vector<2x1xf32>
    %4 = arith.divf %2, %3 : vector<2x1xf32>
    %5 = vector.broadcast %4 : vector<2x1xf32> to vector<2x1024xf32>
    %6 = arith.subf %0, %5 : vector<2x1024xf32>
    %7 = arith.mulf %6, %6 : vector<2x1024xf32>
    %cst_2 = arith.constant dense<0.000000e+00> : vector<2xf32>
    %8 = vector.multi_reduction <add>, %7, %cst_2 [1] : vector<2x1024xf32> to vector<2xf32>
    %9 = vector.shape_cast %8 : vector<2xf32> to vector<2x1xf32>
    %cst_3 = arith.constant 1.023000e+03 : f32
    %10 = vector.broadcast %cst_3 : f32 to vector<2x1xf32>
    %11 = arith.divf %9, %10 : vector<2x1xf32>
    %12 = math.sqrt %11 : vector<2x1xf32>
    %cst_4 = arith.constant 9.99999974E-6 : f32
    %13 = vector.broadcast %cst_4 : f32 to vector<2x1xf32>
    %14 = arith.addf %12, %13 : vector<2x1xf32>
    %15 = tpu.reciprocal %14 : vector<2x1xf32> -> vector<2x1xf32>
    %c0_5 = arith.constant 0 : index
    %c0_6 = arith.constant 0 : index
    %16 = vector.load %arg2[%c0_5, %c0_6] : memref<1x1024xf32, #tpu.memory_space<vmem>>, vector<1x1024xf32>
    %17 = vector.broadcast %16 : vector<1x1024xf32> to vector<2x1024xf32>
    %18 = vector.broadcast %15 : vector<2x1xf32> to vector<2x1024xf32>
    %19 = arith.mulf %17, %18 : vector<2x1024xf32>
    %20 = arith.mulf %6, %19 : vector<2x1024xf32>
    %c0_7 = arith.constant 0 : index
    %c0_8 = arith.constant 0 : index
    %21 = vector.load %arg3[%c0_7, %c0_8] : memref<1x1024xf32, #tpu.memory_space<vmem>>, vector<1x1024xf32>
    %22 = vector.broadcast %21 : vector<1x1024xf32> to vector<2x1024xf32>
    %23 = arith.addf %20, %22 : vector<2x1024xf32>
    %c0_9 = arith.constant 0 : index
    %c0_10 = arith.constant 0 : index
    %24 = vector.load %arg4[%c0_9, %c0_10] : memref<2x1024xf32, #tpu.memory_space<vmem>>, vector<2x1024xf32>
    tpu.vector_store %arg4[%c0_9, %c0_10], %23 {strides = array<i32>} : memref<2x1024xf32, #tpu.memory_space<vmem>>, vector<2x1024xf32>,
    return
  }
  func.func @transform_0(%arg0: i32) -> (i32, i32) {
    %c0_i32 = arith.constant 0 : i32
    %c0_i32_0 = arith.constant 0 : i32
    return %arg0, %c0_i32 : i32, i32
  }
  func.func @transform_1(%arg0: i32) -> (i32, i32) {
    %c0_i32 = arith.constant 0 : i32
    %c0_i32_0 = arith.constant 0 : i32
    %c0_i32_1 = arith.constant 0 : i32
    return %c0_i32, %c0_i32_0 : i32, i32
  }
  func.func @transform_2(%arg0: i32) -> (i32, i32) {
    %c0_i32 = arith.constant 0 : i32
    %c0_i32_0 = arith.constant 0 : i32
    %c0_i32_1 = arith.constant 0 : i32
    return %c0_i32, %c0_i32_0 : i32, i32
  }
  func.func @transform_3(%arg0: i32) -> (i32, i32) {
    %c0_i32 = arith.constant 0 : i32
    %c0_i32_0 = arith.constant 0 : i32
    return %arg0, %c0_i32 : i32, i32
  }
}

</mosaic_0001>

<llo_original>
// kernel: tpu_custom_call.1
$region0: #{tpu_custom_call.1}
  #allocation0 [shape = 'u32[]', space=smem, size = 0x4, offset = 0x4, fixed_abs, tag = 'smem constant byte address 0x4 - core index']
  #allocation1 [shape = 'u32[144,128]{1,0:T(1,128)}', space=vmem, size = 0x12000, scoped, tag = 'internal scratch']
  %s0 = inlined_call_operand.hbm [shape: f32[2,1024], index: 0, kind: input, shape index: {}]
  %s1 = inlined_call_operand.hbm [shape: f32[1,1024], index: 1, kind: input, shape index: {}]
  %s2 = inlined_call_operand.hbm [shape: f32[1,1024], index: 2, kind: input, shape index: {}]
  %s3 = inlined_call_operand.hbm [shape: f32[2,1024], index: 3, kind: output, shape index: {}]
  %s4 = sld [smem:[#allocation0]]
  $region34: #{tpu_custom_call.1} parent=0
    _
  %s6 = ssub.s32 1, %s4
  %s7 = scalar_select 0, %s6, %s4
  $region1: #{tpu_custom_call.1} parent=0
    #allocation2 [shape = 'u8[8192]{0}', space=vmem, size = 0x2000, scoped, tag = 'input window, operand 0, single buffered']
    #allocation3 [shape = 's32[1]{0}', space=sflag, size = 0x4, scoped, tag = 'scoped memory for tpu_custom_call.1']
    #allocation4 [shape = 's32[1]{0}', space=sflag, size = 0x4, scoped, tag = 'scoped memory for tpu_custom_call.1']
    #allocation5 [shape = 'u8[4096]{0}', space=vmem, size = 0x1000, scoped, tag = 'input window, operand 1, single buffered']
    #allocation6 [shape = 's32[1]{0}', space=sflag, size = 0x4, scoped, tag = 'scoped memory for tpu_custom_call.1']
    #allocation7 [shape = 'u8[4096]{0}', space=vmem, size = 0x1000, scoped, tag = 'input window, operand 2, single buffered']
    #allocation8 [shape = 'u8[8192]{0}', space=vmem, size = 0x2000, scoped, tag = 'output window, operand 0, single buffered']
    %8 = vsyncpa [#allocation3], 0
    %9 = vsyncpa [#allocation6], 0
    %10 = vsyncpa [#allocation4], 0
    // Predicated region
    $region2: #{tpu_custom_call.1} parent=1 // pred_check
      _
    $region3: #{tpu_custom_call.1} parent=1 // pred_check_branch
      %12 = sbr.rel (0) target = $region5
    $region4: #{tpu_custom_call.1} parent=1 // pred_region
      %s14 = ssub.s32 256, 256
      %15 = vsyncadd [#allocation3], %s14
      %s17 = sshll.u32 [#allocation2], 4
      %s18 = int_to_ptr.vmem [resolvable:$true] %s17
      %20 = dma.hbm_to_vmem [thread:$0]  %s0, 256, %s18, [#allocation3]
    $region5: #{tpu_custom_call.1} parent=1 // pred_fallthru
      _
    // Predicated region
    $region6: #{tpu_custom_call.1} parent=1 // pred_check
      _
    $region7: #{tpu_custom_call.1} parent=1 // pred_check_branch
      %22 = sbr.rel (0) target = $region9
    $region8: #{tpu_custom_call.1} parent=1 // pred_region
      %s24 = ssub.s32 128, 128
      %25 = vsyncadd [#allocation6], %s24
      %s27 = sshll.u32 [#allocation5], 4
      %s28 = int_to_ptr.vmem [resolvable:$true] %s27
      %30 = dma.hbm_to_vmem [thread:$0]  %s1, 128, %s28, [#allocation6]
    $region9: #{tpu_custom_call.1} parent=1 // pred_fallthru
      _
    // Predicated region
    $region10: #{tpu_custom_call.1} parent=1 // pred_check
      _
    $region11: #{tpu_custom_call.1} parent=1 // pred_check_branch
      %32 = sbr.rel (0) target = $region13
    $region12: #{tpu_custom_call.1} parent=1 // pred_region
      %s34 = ssub.s32 128, 128
      %35 = vsyncadd [#allocation6], %s34
      %s37 = sshll.u32 [#allocation7], 4
      %s38 = int_to_ptr.vmem [resolvable:$true] %s37
      %40 = dma.hbm_to_vmem [thread:$0]  %s2, 128, %s38, [#allocation6]
    $region13: #{tpu_custom_call.1} parent=1 // pred_fallthru
      _
    // Predicated region
    $region14: #{tpu_custom_call.1} parent=1 // pred_check
      _
    $region15: #{tpu_custom_call.1} parent=1 // pred_check_branch
      %42 = sbr.rel (0) target = $region17
    $region16: #{tpu_custom_call.1} parent=1 // pred_region
      %43 = dma.done [#allocation3], 256
    $region17: #{tpu_custom_call.1} parent=1 // pred_fallthru
      _
    // Predicated region
    $region18: #{tpu_custom_call.1} parent=1 // pred_check
      _
    $region19: #{tpu_custom_call.1} parent=1 // pred_check_branch
      %45 = sbr.rel (0) target = $region21
    $region20: #{tpu_custom_call.1} parent=1 // pred_region
      %46 = dma.done [#allocation6], 128
    $region21: #{tpu_custom_call.1} parent=1 // pred_fallthru
      _
    // Predicated region
    $region22: #{tpu_custom_call.1} parent=1 // pred_check
      _
    $region23: #{tpu_custom_call.1} parent=1 // pred_check_branch
      %48 = sbr.rel (0) target = $region25
    $region24: #{tpu_custom_call.1} parent=1 // pred_region
      %49 = dma.done [#allocation6], 128
    $region25: #{tpu_custom_call.1} parent=1 // pred_fallthru
      _
    %v50 = vld [vmem:[#allocation2] sm:$0xff]
    %v51 = vld [vmem:[#allocation2 + $0x8] sm:$0xff]
    %v54 = vcombine.high %v50, %v50
    %v56 = vunpack.c.l.s4 1983009808
    %v57 = vunpack.c.0.s8 %v56
    %v58 = vlaneseq
    %v59 = vshrl.u32 %v58, 7
    %v60 = vsub.s32 %v57, %v59
    %v61 = vrot.slane %v50, %v60
    %v63 = vunpack.c.l.s4 1983009808
    %v64 = vunpack.c.0.s8 %v63
    %v65 = vlaneseq
    %v66 = vshrl.u32 %v65, 7
    %v67 = vsub.s32 %v64, %v66
    %v68 = vrot.slane %v54, %v67
    %v69 = vcombine.high %v61, %v61
    %v70 = vcombine.high %v68, %v68
    %v71 = vcombine.high %v51, %v51
    %v73 = vunpack.c.l.s4 1983009808
    %v74 = vunpack.c.0.s8 %v73
    %v75 = vlaneseq
    %v76 = vshrl.u32 %v75, 7
    %v77 = vsub.s32 %v74, %v76
    %v78 = vrot.slane %v51, %v77
    %v80 = vunpack.c.l.s4 1983009808
    %v81 = vunpack.c.0.s8 %v80
    %v82 = vlaneseq
    %v83 = vshrl.u32 %v82, 7
    %v84 = vsub.s32 %v81, %v83
    %v85 = vrot.slane %v71, %v84
    %v86 = vcombine.high %v78, %v78
    %v87 = vcombine.high %v85, %v85
    %vm96 = vcmask 1041408
    %v97 = vsel %vm96, %v61, 0.0
    %v98 = vsel %vm96, %v69, 0.0
    %v99 = vadd.f32 %v97, %v98
    %v100 = vsel %vm96, %v68, 0.0
    %v101 = vadd.f32 %v99, %v100
    %v102 = vsel %vm96, %v70, 0.0
    %v103 = vadd.f32 %v101, %v102
    %v104 = vsel %vm96, %v78, 0.0
    %v105 = vadd.f32 %v103, %v104
    %v106 = vsel %vm96, %v86, 0.0
    %v107 = vadd.f32 %v105, %v106
    %v108 = vsel %vm96, %v85, 0.0
    %v109 = vadd.f32 %v107, %v108
    %v110 = vsel %vm96, %v87, 0.0
    %v111 = vadd.f32 %v109, %v110
    %112 = vadd.xlane.f32.xlu0 %v111
    %v113 = vpop.xlane.xlu0 %112
    %v114 = vrcp.pop 1024.0
    %v115 = vmul.f32 %v113, %v114
    %v118 = vunpack.c.l.s4 269488144
    %v119 = vunpack.c.0.s8 %v118
    %v120 = vlaneseq
    %v121 = vshrl.u32 %v120, 7
    %v122 = vsub.s32 %v119, %v121
    %v123 = vrot.slane %v115, %v122
    %v125 = vsub.f32 %v50, %v123
    %v126 = vsub.f32 %v51, %v123
    %v127 = vmul.f32 %v125, %v125
    %v128 = vmul.f32 %v126, %v126
    %v131 = vcombine.high %v127, %v127
    %v133 = vunpack.c.l.s4 1983009808
    %v134 = vunpack.c.0.s8 %v133
    %v135 = vlaneseq
    %v136 = vshrl.u32 %v135, 7
    %v137 = vsub.s32 %v134, %v136
    %v138 = vrot.slane %v127, %v137
    %v140 = vunpack.c.l.s4 1983009808
    %v141 = vunpack.c.0.s8 %v140
    %v142 = vlaneseq
    %v143 = vshrl.u32 %v142, 7
    %v144 = vsub.s32 %v141, %v143
    %v145 = vrot.slane %v131, %v144
    %v146 = vcombine.high %v138, %v138
    %v147 = vcombine.high %v145, %v145
    %v148 = vcombine.high %v128, %v128
    %v150 = vunpack.c.l.s4 1983009808
    %v151 = vunpack.c.0.s8 %v150
    %v152 = vlaneseq
    %v153 = vshrl.u32 %v152, 7
    %v154 = vsub.s32 %v151, %v153
    %v155 = vrot.slane %v128, %v154
    %v157 = vunpack.c.l.s4 1983009808
    %v158 = vunpack.c.0.s8 %v157
    %v159 = vlaneseq
    %v160 = vshrl.u32 %v159, 7
    %v161 = vsub.s32 %v158, %v160
    %v162 = vrot.slane %v148, %v161
    %v163 = vcombine.high %v155, %v155
    %v164 = vcombine.high %v162, %v162
    %v173 = vsel %vm96, %v138, 0.0
    %v174 = vsel %vm96, %v146, 0.0
    %v175 = vadd.f32 %v173, %v174
    %v176 = vsel %vm96, %v145, 0.0
    %v177 = vadd.f32 %v175, %v176
    %v178 = vsel %vm96, %v147, 0.0
    %v179 = vadd.f32 %v177, %v178
    %v180 = vsel %vm96, %v155, 0.0
    %v181 = vadd.f32 %v179, %v180
    %v182 = vsel %vm96, %v163, 0.0
    %v183 = vadd.f32 %v181, %v182
    %v184 = vsel %vm96, %v162, 0.0
    %v185 = vadd.f32 %v183, %v184
    %v186 = vsel %vm96, %v164, 0.0
    %v187 = vadd.f32 %v185, %v186
    %188 = vadd.xlane.f32.xlu0 %v187
    %v189 = vpop.xlane.xlu0 %188
    %v190 = vrcp.pop 1023.0
    %v191 = vmul.f32 %v189, %v190
    %v192 = vrsqrt.pop %v191
    %v193 = vmul.f32 %v191, %v192
    %vm194 = vcmp.eq.f32.partialorder %v191, inf
    %v195 = vsel %vm194, %v191, %v193
    %vm196 = vcmp.eq.f32.partialorder %v191, 0.0
    %v197 = vand.u32 %v191, 2147483648
    %v198 = vsel %vm196, %v197, %v195
    %v199 = vadd.f32 %v198, 1e-05
    %v200 = vrcp.pop %v199
    %v201 = vld [vmem:[#allocation5] sm:$0xff]
    %v203 = vlaneseq
    %v204 = vshrl.u32 %v203, 7
    %v205 = vsub.s32 0, %v204
    %v206 = vrot.slane %v201, %v205
    %v207 = vlaneseq
    %v208 = vshrl.u32 %v207, 7
    %v209 = vsub.s32 1, %v208
    %v210 = vrot.slane %v201, %v209
    %v211 = vlaneseq
    %v212 = vshrl.u32 %v211, 7
    %v213 = vsub.s32 2, %v212
    %v214 = vrot.slane %v201, %v213
    %v215 = vlaneseq
    %v216 = vshrl.u32 %v215, 7
    %v217 = vsub.s32 3, %v216
    %v218 = vrot.slane %v201, %v217
    %v219 = vlaneseq
    %v220 = vshrl.u32 %v219, 7
    %v221 = vsub.s32 4, %v220
    %v222 = vrot.slane %v201, %v221
    %v223 = vlaneseq
    %v224 = vshrl.u32 %v223, 7
    %v225 = vsub.s32 5, %v224
    %v226 = vrot.slane %v201, %v225
    %v227 = vlaneseq
    %v228 = vshrl.u32 %v227, 7
    %v229 = vsub.s32 6, %v228
    %v230 = vrot.slane %v201, %v229
    %v231 = vlaneseq
    %v232 = vshrl.u32 %v231, 7
    %v233 = vsub.s32 7, %v232
    %v234 = vrot.slane %v201, %v233
    %v243 = vmul.f32 %v206, %v200
    %v244 = vmul.f32 %v210, %v200
    %v245 = vmul.f32 %v214, %v200
    %v246 = vmul.f32 %v218, %v200
    %v247 = vmul.f32 %v222, %v200
    %v248 = vmul.f32 %v226, %v200
    %v249 = vmul.f32 %v230, %v200
    %v250 = vmul.f32 %v234, %v200
    %v259 = vcombine.low %v243, %v244
    %v260 = vcombine.low %v245, %v246
    %v262 = vunpack.c.l.s4 1983009808
    %v263 = vunpack.c.0.s8 %v262
    %v264 = vlaneseq
    %v265 = vshrl.u32 %v264, 7
    %v266 = vsub.s32 %v263, %v265
    %v267 = vrot.slane %v259, %v266
    %v269 = vunpack.c.l.s4 1983009808
    %v270 = vunpack.c.0.s8 %v269
    %v271 = vlaneseq
    %v272 = vshrl.u32 %v271, 7
    %v273 = vsub.s32 %v270, %v272
    %v274 = vrot.slane %v260, %v273
    %v275 = vcombine.low %v267, %v274
    %v276 = vcombine.low %v247, %v248
    %v277 = vcombine.low %v249, %v250
    %v279 = vunpack.c.l.s4 1983009808
    %v280 = vunpack.c.0.s8 %v279
    %v281 = vlaneseq
    %v282 = vshrl.u32 %v281, 7
    %v283 = vsub.s32 %v280, %v282
    %v284 = vrot.slane %v276, %v283
    %v286 = vunpack.c.l.s4 1983009808
    %v287 = vunpack.c.0.s8 %v286
    %v288 = vlaneseq
    %v289 = vshrl.u32 %v288, 7
    %v290 = vsub.s32 %v287, %v289
    %v291 = vrot.slane %v277, %v290
    %v292 = vcombine.low %v284, %v291
    %v295 = vmul.f32 %v125, %v275
    %v296 = vmul.f32 %v126, %v292
    %v297 = vld [vmem:[#allocation7] sm:$0xff]
    %v299 = vlaneseq
    %v300 = vshrl.u32 %v299, 7
    %v301 = vsub.s32 0, %v300
    %v302 = vrot.slane %v297, %v301
    %v303 = vlaneseq
    %v304 = vshrl.u32 %v303, 7
    %v305 = vsub.s32 1, %v304
    %v306 = vrot.slane %v297, %v305
    %v307 = vlaneseq
    %v308 = vshrl.u32 %v307, 7
    %v309 = vsub.s32 2, %v308
    %v310 = vrot.slane %v297, %v309
    %v311 = vlaneseq
    %v312 = vshrl.u32 %v311, 7
    %v313 = vsub.s32 3, %v312
    %v314 = vrot.slane %v297, %v313
    %v315 = vlaneseq
    %v316 = vshrl.u32 %v315, 7
    %v317 = vsub.s32 4, %v316
    %v318 = vrot.slane %v297, %v317
    %v319 = vlaneseq
    %v320 = vshrl.u32 %v319, 7
    %v321 = vsub.s32 5, %v320
    %v322 = vrot.slane %v297, %v321
    %v323 = vlaneseq
    %v324 = vshrl.u32 %v323, 7
    %v325 = vsub.s32 6, %v324
    %v326 = vrot.slane %v297, %v325
    %v327 = vlaneseq
    %v328 = vshrl.u32 %v327, 7
    %v329 = vsub.s32 7, %v328
    %v330 = vrot.slane %v297, %v329
    %v331 = vcombine.low %v302, %v306
    %v332 = vcombine.low %v310, %v314
    %v334 = vunpack.c.l.s4 1983009808
    %v335 = vunpack.c.0.s8 %v334
    %v336 = vlaneseq
    %v337 = vshrl.u32 %v336, 7
    %v338 = vsub.s32 %v335, %v337
    %v339 = vrot.slane %v331, %v338
    %v341 = vunpack.c.l.s4 1983009808
    %v342 = vunpack.c.0.s8 %v341
    %v343 = vlaneseq
    %v344 = vshrl.u32 %v343, 7
    %v345 = vsub.s32 %v342, %v344
    %v346 = vrot.slane %v332, %v345
    %v347 = vcombine.low %v339, %v346
    %v348 = vcombine.low %v318, %v322
    %v349 = vcombine.low %v326, %v330
    %v351 = vunpack.c.l.s4 1983009808
    %v352 = vunpack.c.0.s8 %v351
    %v353 = vlaneseq
    %v354 = vshrl.u32 %v353, 7
    %v355 = vsub.s32 %v352, %v354
    %v356 = vrot.slane %v348, %v355
    %v358 = vunpack.c.l.s4 1983009808
    %v359 = vunpack.c.0.s8 %v358
    %v360 = vlaneseq
    %v361 = vshrl.u32 %v360, 7
    %v362 = vsub.s32 %v359, %v361
    %v363 = vrot.slane %v349, %v362
    %v364 = vcombine.low %v356, %v363
    %v367 = vadd.f32 %v295, %v347
    %v368 = vadd.f32 %v296, %v364
    %369 = vst [vmem:[#allocation8] sm:$0xff] %v367
    %370 = vst [vmem:[#allocation8 + $0x8] sm:$0xff] %v368
    // Predicated region
    $region26: #{tpu_custom_call.1} parent=1 // pred_check
      _
    $region27: #{tpu_custom_call.1} parent=1 // pred_check_branch
      %372 = sbr.rel (0) target = $region29
    $region28: #{tpu_custom_call.1} parent=1 // pred_region
      %s374 = ssub.s32 256, 256
      %375 = vsyncadd [#allocation4], %s374
      %s377 = sshll.u32 [#allocation8], 4
      %s378 = int_to_ptr.vmem [resolvable:$true] %s377
      %380 = dma.vmem_to_hbm [thread:$0]  %s378, 256, %s3, [#allocation4]
    $region29: #{tpu_custom_call.1} parent=1 // pred_fallthru
      _
    // Predicated region
    $region30: #{tpu_custom_call.1} parent=1 // pred_check
      _
    $region31: #{tpu_custom_call.1} parent=1 // pred_check_branch
      %382 = sbr.rel (0) target = $region33
    $region32: #{tpu_custom_call.1} parent=1 // pred_region
      %383 = dma.done [#allocation4], 256
    $region33: #{tpu_custom_call.1} parent=1 // pred_fallthru
      _
    %384 = vsyncpa [#allocation3], 1
    %385 = vsyncpa [#allocation6], 1
    %386 = vsyncpa [#allocation4], 1

</llo_original>
